<compile_context>
chip_gen: v7x
topology: tpu7x:2x2x1
jax: 0.10.0
libtpu: 0.0.40
codegen_flags: <defaults>
</compile_context>

<pallas_src>
import functools

import jax
import jax.numpy as jnp
from jax.experimental import pallas as pl
from jax.experimental.pallas import tpu as pltpu


def _coordconv_mix_kernel(x_ref, w_ref, cb_ref, o_ref, *, C):
    """One grid step: (1, C, TS) input block -> (1, C, TS) output block.

    out[co, :] = sum_ci (w + I)[co, ci] * x[ci, :] + coord_bias[co, :]
    where coord_bias already folds the xx/yy coordinate-channel contributions
    and the conv bias, and (w + I) folds the residual add.
    """
    x = x_ref[0].astype(jnp.float32)      # (C, TS), promote once, accumulate in f32
    w = w_ref[...]                        # (C, C) folded weight (load hoisted out of loop)
    y = cb_ref[...]                       # (C, TS) coord+bias contribution (f32)
    for ci in range(C):                   # C is tiny (4): fully unrolled VPU FMAs
        y = y + w[:, ci:ci + 1] * x[ci:ci + 1, :]
    o_ref[0] = y.astype(o_ref.dtype)      # single lane-dense store, cast at the end


def _choose_spatial_tile(S, max_pixels=65536):
    """Largest tile TS dividing S with TS % 128 == 0 (or TS == S), capped at max_pixels."""
    if S <= max_pixels:
        return S
    for cand in range((max_pixels // 128) * 128, 0, -128):
        if S % cand == 0:
            return cand
    return S   # no lane-aligned divisor (rare shapes): run as one full-extent block


def coordconv_channel_mapper(x_nchw, conv_weight, conv_bias, *, normalize=True,
                             max_spatial_tile=65536):
    """Pallas implementation of: channel_mapper(coord_adder(sample)) + sample.

    x_nchw:      (N, C, H, W)      -- PyTorch NCHW sample
    conv_weight: (C, C + 2, 1, 1)  -- nn.Conv2d(C+2, C, kernel_size=1) weight
    conv_bias:   (C,)              -- conv bias
    Returns mapped_sample with shape (N, C, H, W).
    """
    N, C, H, W = x_nchw.shape
    S = H * W

    w2 = conv_weight[:, :, 0, 0].astype(jnp.float32)          # (C_out, C_in + 2)
    # Residual folded into the channel-mix weight.
    w_eff = w2[:, :C] + jnp.eye(C, dtype=jnp.float32)          # (C, C)
    # Coord-channel order assumed [xx, yy] appended after the input channels
    # (matches the in-file reference / AddCoordinateChannels used here).
    w_xx = w2[:, C]                                            # (C,)
    w_yy = w2[:, C + 1]                                        # (C,)

    ys = jnp.arange(H, dtype=jnp.float32)
    xs = jnp.arange(W, dtype=jnp.float32)
    if normalize:
        ys = 2.0 * ys / float(max(H - 1, 1)) - 1.0
        xs = 2.0 * xs / float(max(W - 1, 1)) - 1.0
    yy = jnp.broadcast_to(ys[:, None], (H, W)).reshape(S)      # (S,) row coord
    xx = jnp.broadcast_to(xs[None, :], (H, W)).reshape(S)      # (S,) col coord
    # Coord + bias contribution pre-folded per output channel: (C, S), f32.
    coord_bias = (w_xx[:, None] * xx[None, :]
                  + w_yy[:, None] * yy[None, :]
                  + conv_bias.astype(jnp.float32)[:, None])

    x3 = x_nchw.reshape(N, C, S)            # free view: NCHW is contiguous over H*W
    TS = _choose_spatial_tile(S, max_spatial_tile)
    num_s = S // TS

    kernel = functools.partial(_coordconv_mix_kernel, C=C)

    out3 = pl.pallas_call(
        kernel,
        out_shape=jax.ShapeDtypeStruct((N, C, S), x_nchw.dtype),
        grid_spec=pltpu.PrefetchScalarGridSpec(
            num_scalar_prefetch=0,
            # Spatial blocks outer / batch inner so coord_bias is only re-DMA'd
            # when the spatial block changes (once per block, amortized over N).
            grid=(num_s, N),
            in_specs=[
                pl.BlockSpec((1, C, TS), lambda s, n: (n, 0, s)),   # x tile
                pl.BlockSpec((C, C), lambda s, n: (0, 0)),          # folded (w + I)
                pl.BlockSpec((C, TS), lambda s, n: (0, s)),         # coord+bias map
            ],
            out_specs=pl.BlockSpec((1, C, TS), lambda s, n: (n, 0, s)),
        ),
        compiler_params=pltpu.CompilerParams(
            dimension_semantics=("parallel", "parallel")),
    )(x3, w_eff, coord_bias)

    return out3.reshape(N, C, H, W)


def coordconv_unet2d_forward(sample, timestep, conv_weight, conv_bias,
                             *, normalize=True):
    """Forward pass of CoordConvUNet2DModel (UNet body not reproducible here)."""
    mapped_sample = coordconv_channel_mapper(
        sample, conv_weight, conv_bias, normalize=normalize)
    # TODO(synk): return self.unet(mapped_sample, timestep) — external UNet2DModel.
    del timestep
    return mapped_sample


def _reference(sample, conv_weight, conv_bias, *, normalize=True):
    """Pure-JAX reference of coord_adder + 1x1 conv + residual (for sanity check)."""
    N, C, H, W = sample.shape
    ys = jnp.arange(H, dtype=jnp.float32)
    xs = jnp.arange(W, dtype=jnp.float32)
    if normalize:
        ys = 2.0 * ys / max(H - 1, 1) - 1.0
        xs = 2.0 * xs / max(W - 1, 1) - 1.0
    yy = jnp.broadcast_to(ys[:, None], (H, W))
    xx = jnp.broadcast_to(xs[None, :], (H, W))
    coords = jnp.stack([xx, yy], axis=0)                        # (2, H, W)
    coords = jnp.broadcast_to(coords[None], (N, 2, H, W)).astype(sample.dtype)
    aug = jnp.concatenate([sample, coords], axis=1)             # (N, C+2, H, W)
    w2 = conv_weight[:, :, 0, 0]                                # (C, C+2)
    out = jnp.einsum('nihw,oi->nohw', aug, w2) + conv_bias[None, :, None, None]
    return out + sample


if __name__ == "__main__":
    key = jax.random.PRNGKey(0)
    k_x, k_w, k_b = jax.random.split(key, 3)

    N, C, H, W = 2, 4, 16, 16
    sample = jax.random.normal(k_x, (N, C, H, W), dtype=jnp.float32)
    timestep = jnp.array(10, dtype=jnp.int32)

    # nn.Conv2d(C+2, C, kernel_size=1) params, kaiming-uniform-like deterministic init.
    fan_in = C + 2
    bound = 1.0 / (fan_in ** 0.5)
    conv_weight = jax.random.uniform(
        k_w, (C, C + 2, 1, 1), dtype=jnp.float32, minval=-bound, maxval=bound)
    conv_bias = jax.random.uniform(
        k_b, (C,), dtype=jnp.float32, minval=-bound, maxval=bound)

    out = coordconv_unet2d_forward(sample, timestep, conv_weight, conv_bias)
    out = jax.block_until_ready(out)

    ref = _reference(sample, conv_weight, conv_bias)
    assert out.shape == (N, C, H, W)
    assert jnp.allclose(out, ref, atol=1e-5, rtol=1e-5), "mismatch vs JAX reference"

    print("KERNEL_OK")
</pallas_src>

<mosaic_0001>
module attributes {stable_mosaic.version = 11 : i64} {
  func.func @_coordconv_mix_kernel(%arg0: i32, %arg1: i32, %arg2: memref<1x4x256xf32, #tpu.memory_space<vmem>>, %arg3: memref<4x4xf32, #tpu.memory_space<vmem>>, %arg4: memref<4x256xf32, #tpu.memory_space<vmem>>, %arg5: memref<1x4x256xf32, #tpu.memory_space<vmem>>) attributes {dimension_semantics = [#tpu.dimension_semantics<parallel>, #tpu.dimension_semantics<parallel>], iteration_bounds = array<i64: 1, 2>, scalar_prefetch = 0 : i64, scratch_operands = 0 : i64, tpu.core_type = #tpu.core_type<tc>, window_params = [{transform_indices = @transform_0, window_bounds = array<i64: 1, 4, 256>}, {pipeline_mode = #tpu.pipeline_mode<synchronous>, transform_indices = @transform_1, window_bounds = array<i64: 4, 4>}, {transform_indices = @transform_2, window_bounds = array<i64: 4, 256>}, {transform_indices = @transform_3, window_bounds = array<i64: 1, 4, 256>}]} {
    %c0 = arith.constant 0 : index
    %c0_0 = arith.constant 0 : index
    %c0_1 = arith.constant 0 : index
    %0 = vector.load %arg2[%c0, %c0_0, %c0_1] : memref<1x4x256xf32, #tpu.memory_space<vmem>>, vector<1x4x256xf32>
    %1 = vector.shape_cast %0 : vector<1x4x256xf32> to vector<4x256xf32>
    %c0_2 = arith.constant 0 : index
    %c0_3 = arith.constant 0 : index
    %2 = vector.load %arg3[%c0_2, %c0_3] : memref<4x4xf32, #tpu.memory_space<vmem>>, vector<4x4xf32>
    %c0_4 = arith.constant 0 : index
    %c0_5 = arith.constant 0 : index
    %3 = vector.load %arg4[%c0_4, %c0_5] : memref<4x256xf32, #tpu.memory_space<vmem>>, vector<4x256xf32>
    %4 = vector.extract_strided_slice %2 {offsets = [0, 0], sizes = [4, 1], strides = [1, 1]} : vector<4x4xf32> to vector<4x1xf32>
    %5 = vector.extract_strided_slice %1 {offsets = [0, 0], sizes = [1, 256], strides = [1, 1]} : vector<4x256xf32> to vector<1x256xf32>
    %6 = vector.broadcast %4 : vector<4x1xf32> to vector<4x256xf32>
    %7 = vector.broadcast %5 : vector<1x256xf32> to vector<4x256xf32>
    %8 = arith.mulf %6, %7 : vector<4x256xf32>
    %9 = arith.addf %3, %8 : vector<4x256xf32>
    %10 = vector.extract_strided_slice %2 {offsets = [0, 1], sizes = [4, 1], strides = [1, 1]} : vector<4x4xf32> to vector<4x1xf32>
    %11 = vector.extract_strided_slice %1 {offsets = [1, 0], sizes = [1, 256], strides = [1, 1]} : vector<4x256xf32> to vector<1x256xf32>
    %12 = vector.broadcast %10 : vector<4x1xf32> to vector<4x256xf32>
    %13 = vector.broadcast %11 : vector<1x256xf32> to vector<4x256xf32>
    %14 = arith.mulf %12, %13 : vector<4x256xf32>
    %15 = arith.addf %9, %14 : vector<4x256xf32>
    %16 = vector.extract_strided_slice %2 {offsets = [0, 2], sizes = [4, 1], strides = [1, 1]} : vector<4x4xf32> to vector<4x1xf32>
    %17 = vector.extract_strided_slice %1 {offsets = [2, 0], sizes = [1, 256], strides = [1, 1]} : vector<4x256xf32> to vector<1x256xf32>
    %18 = vector.broadcast %16 : vector<4x1xf32> to vector<4x256xf32>
    %19 = vector.broadcast %17 : vector<1x256xf32> to vector<4x256xf32>
    %20 = arith.mulf %18, %19 : vector<4x256xf32>
    %21 = arith.addf %15, %20 : vector<4x256xf32>
    %22 = vector.extract_strided_slice %2 {offsets = [0, 3], sizes = [4, 1], strides = [1, 1]} : vector<4x4xf32> to vector<4x1xf32>
    %23 = vector.extract_strided_slice %1 {offsets = [3, 0], sizes = [1, 256], strides = [1, 1]} : vector<4x256xf32> to vector<1x256xf32>
    %24 = vector.broadcast %22 : vector<4x1xf32> to vector<4x256xf32>
    %25 = vector.broadcast %23 : vector<1x256xf32> to vector<4x256xf32>
    %26 = arith.mulf %24, %25 : vector<4x256xf32>
    %27 = arith.addf %21, %26 : vector<4x256xf32>
    %c0_6 = arith.constant 0 : index
    %c0_7 = arith.constant 0 : index
    %c0_8 = arith.constant 0 : index
    %28 = vector.load %arg5[%c0_6, %c0_7, %c0_8] : memref<1x4x256xf32, #tpu.memory_space<vmem>>, vector<1x4x256xf32>
    %29 = vector.shape_cast %28 : vector<1x4x256xf32> to vector<4x256xf32>
    %30 = vector.shape_cast %27 : vector<4x256xf32> to vector<1x4x256xf32>
    tpu.vector_store %arg5[%c0_6, %c0_7, %c0_8], %30 {strides = array<i32>} : memref<1x4x256xf32, #tpu.memory_space<vmem>>, vector<1x4x256xf32>,
    return
  }
  func.func @transform_0(%arg0: i32, %arg1: i32) -> (i32, i32, i32) {
    %c0_i32 = arith.constant 0 : i32
    %c0_i32_0 = arith.constant 0 : i32
    return %arg1, %c0_i32, %arg0 : i32, i32, i32
  }
  func.func @transform_1(%arg0: i32, %arg1: i32) -> (i32, i32) {
    %c0_i32 = arith.constant 0 : i32
    %c0_i32_0 = arith.constant 0 : i32
    %c0_i32_1 = arith.constant 0 : i32
    return %c0_i32, %c0_i32_0 : i32, i32
  }
  func.func @transform_2(%arg0: i32, %arg1: i32) -> (i32, i32) {
    %c0_i32 = arith.constant 0 : i32
    %c0_i32_0 = arith.constant 0 : i32
    return %c0_i32, %arg0 : i32, i32
  }
  func.func @transform_3(%arg0: i32, %arg1: i32) -> (i32, i32, i32) {
    %c0_i32 = arith.constant 0 : i32
    %c0_i32_0 = arith.constant 0 : i32
    return %arg1, %c0_i32, %arg0 : i32, i32, i32
  }
}

</mosaic_0001>

<llo_original>
// kernel: tpu_custom_call.1
$region0: #{tpu_custom_call.1}
  #allocation0 [shape = 'u32[]', space=smem, size = 0x4, offset = 0x4, fixed_abs, tag = 'smem constant byte address 0x4 - core index']
  #allocation1 [shape = 'u32[144,128]{1,0:T(1,128)}', space=vmem, size = 0x12000, scoped, tag = 'internal scratch']
  %s0 = inlined_call_operand.hbm [shape: f32[2,4,256], index: 0, kind: input, shape index: {}]
  %s1 = inlined_call_operand.hbm [shape: f32[4,4], index: 1, kind: input, shape index: {}]
  %s2 = inlined_call_operand.hbm [shape: f32[4,256], index: 2, kind: input, shape index: {}]
  %s3 = inlined_call_operand.hbm [shape: f32[2,4,256], index: 3, kind: output, shape index: {}]
  %s4 = sld [smem:[#allocation0]]
  $region57: #{tpu_custom_call.1} parent=0
    _
  %s6 = ssub.s32 1, %s4
  %s7 = scalar_select 0, %s6, %s4
  $region1: #{tpu_custom_call.1} parent=0
    #allocation2 [shape = 'u8[8192]{0}', space=vmem, size = 0x2000, scoped, tag = 'input window, operand 0']
    #allocation3 [shape = 's32[2]{0}', space=sflag, size = 0x8, scoped, tag = 'scoped memory for tpu_custom_call.1']
    #allocation4 [shape = 's32[2]{0}', space=sflag, size = 0x8, scoped, tag = 'scoped memory for tpu_custom_call.1']
    #allocation5 [shape = 'u8[2048]{0}', space=vmem, size = 0x800, scoped, tag = 'input window, operand 1, single buffered']
    #allocation6 [shape = 's32[1]{0}', space=sflag, size = 0x4, scoped, tag = 'scoped memory for tpu_custom_call.1']
    #allocation7 [shape = 'u8[4096]{0}', space=vmem, size = 0x1000, scoped, tag = 'input window, operand 2, single buffered']
    #allocation8 [shape = 'u8[8192]{0}', space=vmem, size = 0x2000, scoped, tag = 'output window, operand 0']
    %8 = vsyncpa [#allocation3], 0
    %s9 = scalar_lea.sflag [#allocation3], 1
    %10 = vsyncpa %s9, 0
    %11 = vsyncpa [#allocation6], 0
    %12 = vsyncpa [#allocation4], 0
    %s13 = scalar_lea.sflag [#allocation4], 1
    %14 = vsyncpa %s13, 0
    loop: start=0, step=1, limit=4
    $region2: #{tpu_custom_call.1} parent=1 // loop_pre_header
      _
    $region3: #{tpu_custom_call.1} parent=1 // loop_header
      %s16 = sphi 0, %s20
      %p17 = scmp.ge.s32.totalorder %s16, 4
      %s23 = sphi 0, %s35
      %s24 = sphi 0, %s31
      %s25 = sphi 0, %s23
      %s26 = sphi 0, %s24
      %s27 = sphi 0, %s25
      %s28 = sphi 0, %s26
      %s40 = sphi 0, %s42
      %s43 = sphi 0, %s40
      %s44 = sphi 0, %s43
      %s60 = sphi 0, %s44
      %s64 = sphi 0, %s64
      %s66 = sphi 0, %s64
      %s67 = sphi 0, %s66
      %s81 = sphi 0, %s67
      %s87 = sphi 0, %s89
      %s90 = sphi 0, %s87
      %s91 = sphi 0, %s90
      %s107 = sphi 0, %s91
      %s115 = sphi 0, %s117
      %s118 = sphi 0, %s115
      %s119 = sphi 0, %s118
      %s135 = sphi 0, %s119
    $region4: #{tpu_custom_call.1} parent=1 // loop_header_branch
      %19 = sbr.rel (%p17) target = $region8
    $region5: #{tpu_custom_call.1} parent=1 // loop_body
      %s21 = ssub.s32 %s16, 1
      %s22 = ssub.s32 %s16, 2
      %s29 = sadd.s32 1, %s24
      %p30 = scmp.ge.s32.totalorder %s29, 2
      %s31 = scalar_select %p30, 0, %s29
      %s32 = sadd.s32 1, %s23
      %s33 = scalar_select %p30, %s32, %s23
      %p34 = scmp.ge.s32.totalorder %s33, 1
      %s35 = scalar_select %p34, 0, %s33
      %s36 = ssub.s32 %s24, %s31
      %s37 = ssub.s32 %s23, %s35
      %s38 = sor.u32 %s36, %s37
      %p39 = scmp.eq.s32.totalorder %s38, 0
      %s41 = sadd.s32 %s40, 1
      %s42 = scalar_select %p39, %s40, %s41
      %p45 = pneg %p39
      %p46 = scmp.eq.s32.totalorder %s16, 1
      %p47 = por %p45, %p46
      %p48 = scmp.ne.s32.totalorder %s40, %s43
      %p49 = scmp.eq.s32.totalorder %s16, 0
      %p50 = por %p48, %p49
      %p51 = scmp.ne.s32.totalorder %s40, %s43
      %p52 = scmp.eq.s32.totalorder %s21, 1
      %p53 = por %p51, %p52
      %p54 = scmp.ne.s32.totalorder %s43, %s44
      %p55 = scmp.eq.s32.totalorder %s21, 0
      %p56 = por %p54, %p55
      %p57 = scmp.ne.s32.totalorder %s43, %s44
      %p58 = scmp.eq.s32.totalorder %s22, 1
      %p59 = por %p57, %p58
      %p61 = scmp.ne.s32.totalorder %s44, %s60
      %p62 = scmp.eq.s32.totalorder %s22, 0
      %p63 = por %p61, %p62
      %s65 = sadd.s32 %s64, 1
      %p68 = scmp.eq.s32.totalorder %s16, 1
      %p69 = scmp.ne.s32.totalorder %s64, %s66
      %p70 = scmp.eq.s32.totalorder %s16, 0
      %p71 = por %p69, %p70
      %p72 = scmp.ne.s32.totalorder %s64, %s66
      %p73 = scmp.eq.s32.totalorder %s21, 1
      %p74 = por %p72, %p73
      %p75 = scmp.ne.s32.totalorder %s66, %s67
      %p76 = scmp.eq.s32.totalorder %s21, 0
      %p77 = por %p75, %p76
      %p78 = scmp.ne.s32.totalorder %s66, %s67
      %p79 = scmp.eq.s32.totalorder %s22, 1
      %p80 = por %p78, %p79
      %p82 = scmp.ne.s32.totalorder %s67, %s81
      %p83 = scmp.eq.s32.totalorder %s22, 0
      %p84 = por %p82, %p83
      %s85 = ssub.s32 %s23, %s35
      %p86 = scmp.eq.s32.totalorder %s85, 0
      %s88 = sadd.s32 %s87, 1
      %s89 = scalar_select %p86, %s87, %s88
      %p92 = pneg %p86
      %p93 = scmp.eq.s32.totalorder %s16, 1
      %p94 = por %p92, %p93
      %p95 = scmp.ne.s32.totalorder %s87, %s90
      %p96 = scmp.eq.s32.totalorder %s16, 0
      %p97 = por %p95, %p96
      %p98 = scmp.ne.s32.totalorder %s87, %s90
      %p99 = scmp.eq.s32.totalorder %s21, 1
      %p100 = por %p98, %p99
      %p101 = scmp.ne.s32.totalorder %s90, %s91
      %p102 = scmp.eq.s32.totalorder %s21, 0
      %p103 = por %p101, %p102
      %p104 = scmp.ne.s32.totalorder %s90, %s91
      %p105 = scmp.eq.s32.totalorder %s22, 1
      %p106 = por %p104, %p105
      %p108 = scmp.ne.s32.totalorder %s91, %s107
      %p109 = scmp.eq.s32.totalorder %s22, 0
      %p110 = por %p108, %p109
      %s111 = ssub.s32 %s24, %s31
      %s112 = ssub.s32 %s23, %s35
      %s113 = sor.u32 %s111, %s112
      %p114 = scmp.eq.s32.totalorder %s113, 0
      %s116 = sadd.s32 %s115, 1
      %s117 = scalar_select %p114, %s115, %s116
      %p120 = pneg %p114
      %p121 = scmp.eq.s32.totalorder %s16, 1
      %p122 = por %p120, %p121
      %p123 = scmp.ne.s32.totalorder %s115, %s118
      %p124 = scmp.eq.s32.totalorder %s16, 0
      %p125 = por %p123, %p124
      %p126 = scmp.ne.s32.totalorder %s115, %s118
      %p127 = scmp.eq.s32.totalorder %s21, 1
      %p128 = por %p126, %p127
      %p129 = scmp.ne.s32.totalorder %s118, %s119
      %p130 = scmp.eq.s32.totalorder %s21, 0
      %p131 = por %p129, %p130
      %p132 = scmp.ne.s32.totalorder %s118, %s119
      %p133 = scmp.eq.s32.totalorder %s22, 1
      %p134 = por %p132, %p133
      %p136 = scmp.ne.s32.totalorder %s119, %s135
      %p137 = scmp.eq.s32.totalorder %s22, 0
      %p138 = por %p136, %p137
      %p139 = scmp.le.s32.totalorder 1, %s16
      %p140 = scmp.lt.s32.totalorder %s16, 3
      %p141 = pnand %p139, %p140
      %p142 = pneg %p141
      // Predicated region
      $region9: #{tpu_custom_call.1} parent=5 // pred_check
        _
      $region10: #{tpu_custom_call.1} parent=5 // pred_check_branch
        %144 = sbr.rel (%p141) target = $region12
      $region11: #{tpu_custom_call.1} parent=5 // pred_region
        %s145 = ssub.s32 %s16, 1
        // Predicated region
        $region13: #{tpu_custom_call.1} parent=11 // pred_check
          %p146 = pneg %p77
        $region14: #{tpu_custom_call.1} parent=11 // pred_check_branch
          %148 = sbr.rel (%p146) target = $region16
        $region15: #{tpu_custom_call.1} parent=11 // pred_region
          %s150 = ssub.s32 64, 64
          %151 = vsyncadd [#allocation6], %s150
          %s153 = sshll.u32 [#allocation5], 4
          %s154 = int_to_ptr.vmem [resolvable:$true] %s153
          %156 = dma.hbm_to_vmem [thread:$0]  %s1, 64, %s154, [#allocation6]
        $region16: #{tpu_custom_call.1} parent=11 // pred_fallthru
          _
        // Predicated region
        $region17: #{tpu_custom_call.1} parent=11 // pred_check
          %p157 = pneg %p103
        $region18: #{tpu_custom_call.1} parent=11 // pred_check_branch
          %159 = sbr.rel (%p157) target = $region20
        $region19: #{tpu_custom_call.1} parent=11 // pred_region
          %s160 = smul.u32 2, %s25
          %s162 = ssub.s32 128, 128
          %163 = vsyncadd [#allocation6], %s162
          %s164 = smul.addr %s160, 64
          %s165 = scalar_lea.hbm %s2, %s164
          %s167 = sshll.u32 [#allocation7], 4
          %s168 = int_to_ptr.vmem [resolvable:$true] %s167
          %170 = dma.hbm_to_vmem [thread:$0]  %s165, 128, %s168, [#allocation6]
        $region20: #{tpu_custom_call.1} parent=11 // pred_fallthru
          _
      $region12: #{tpu_custom_call.1} parent=5 // pred_fallthru
        _
      %p171 = scmp.lt.s32.totalorder %s16, 2
      // Predicated region
      $region21: #{tpu_custom_call.1} parent=5 // pred_check
        %p172 = pneg %p171
      $region22: #{tpu_custom_call.1} parent=5 // pred_check_branch
        %174 = sbr.rel (%p172) target = $region24
      $region23: #{tpu_custom_call.1} parent=5 // pred_region
        // Predicated region
        $region25: #{tpu_custom_call.1} parent=23 // pred_check
          %p175 = pneg %p50
        $region26: #{tpu_custom_call.1} parent=23 // pred_check_branch
          %177 = sbr.rel (%p175) target = $region28
        $region27: #{tpu_custom_call.1} parent=23 // pred_region
          %s178 = sand.u32 %s40, 1
          %s179 = scalar_lea.sflag [#allocation3], %s178
          %s180 = sand.u32 %s40, 1
          %s181 = smul.addr %s180, 8
          %s182 = scalar_lea.vmem [#allocation2], %s181
          %s183 = smul.u32 2, %s23
          %s185 = ssub.s32 128, 128
          %186 = vsyncadd %s179, %s185
          %s187 = smul.addr %s24, 2
          %s188 = sadd.s32 %s183, %s187
          %s189 = smul.addr %s188, 64
          %s190 = scalar_lea.hbm %s0, %s189
          %s192 = sshll.u32 %s182, 4
          %s193 = int_to_ptr.vmem [resolvable:$true] %s192
          %195 = dma.hbm_to_vmem [thread:$0]  %s190, 128, %s193, %s179
        $region28: #{tpu_custom_call.1} parent=23 // pred_fallthru
          _
      $region24: #{tpu_custom_call.1} parent=5 // pred_fallthru
        _
      %p196 = scmp.le.s32.totalorder 1, %s16
      %p197 = scmp.lt.s32.totalorder %s16, 3
      %p198 = pnand %p196, %p197
      %p199 = pneg %p198
      // Predicated region
      $region29: #{tpu_custom_call.1} parent=5 // pred_check
        _
      $region30: #{tpu_custom_call.1} parent=5 // pred_check_branch
        %201 = sbr.rel (%p198) target = $region32
      $region31: #{tpu_custom_call.1} parent=5 // pred_region
        %s202 = ssub.s32 %s16, 1
        %s203 = sand.u32 %s43, 1
        %s204 = scalar_lea.sflag [#allocation3], %s203
        %s205 = sand.u32 %s43, 1
        %s206 = smul.addr %s205, 8
        %s207 = scalar_lea.vmem [#allocation2], %s206
        // Predicated region
        $region33: #{tpu_custom_call.1} parent=31 // pred_check
          %p208 = pneg %p56
        $region34: #{tpu_custom_call.1} parent=31 // pred_check_branch
          %210 = sbr.rel (%p208) target = $region36
        $region35: #{tpu_custom_call.1} parent=31 // pred_region
          %211 = dma.done %s204, 128
        $region36: #{tpu_custom_call.1} parent=31 // pred_fallthru
          _
        // Predicated region
        $region37: #{tpu_custom_call.1} parent=31 // pred_check
          %p212 = pneg %p77
        $region38: #{tpu_custom_call.1} parent=31 // pred_check_branch
          %214 = sbr.rel (%p212) target = $region40
        $region39: #{tpu_custom_call.1} parent=31 // pred_region
          %215 = dma.done [#allocation6], 64
        $region40: #{tpu_custom_call.1} parent=31 // pred_fallthru
          _
        // Predicated region
        $region41: #{tpu_custom_call.1} parent=31 // pred_check
          %p216 = pneg %p103
        $region42: #{tpu_custom_call.1} parent=31 // pred_check_branch
          %218 = sbr.rel (%p216) target = $region44
        $region43: #{tpu_custom_call.1} parent=31 // pred_region
          %219 = dma.done [#allocation6], 128
        $region44: #{tpu_custom_call.1} parent=31 // pred_fallthru
          _
        %s220 = sand.u32 %s43, 1
        %s221 = scalar_lea.sflag [#allocation3], %s220
        %s222 = sand.u32 %s43, 1
        %s223 = smul.addr %s222, 8
        %s224 = scalar_lea.vmem [#allocation2], %s223
        %p225 = pneg %p56
        %p226 = pneg %p53
        %p227 = pneg %p77
        %p228 = pneg %p74
        %p229 = pneg %p103
        %p230 = pneg %p100
        %p231 = pneg %p131
        %p232 = pneg %p128
        %s233 = sand.u32 %s118, 1
        %s234 = scalar_lea.sflag [#allocation4], %s233
        %s235 = sand.u32 %s118, 1
        %s236 = smul.addr %s235, 8
        %s237 = scalar_lea.vmem [#allocation8], %s236
        %s238 = smul.u32 2, %s25
        %s239 = smul.u32 2, %s25
        %s240 = smul.u32 2, %s25
        %v241 = vld [vmem:[%s207] sm:$0xff]
        %v242 = vld [vmem:[#allocation5] sm:$0xf]
        %v243 = vld [vmem:[#allocation7] sm:$0xff]
        %245 = vset.pattern.permute.xlu0 0
        %246 = vperm.xlu0 %245, %v242
        %v247 = vpop.permute.xlu0 %246
        %v250 = vlaneseq
        %v251 = vshrl.u32 %v250, 7
        %v252 = vsub.s32 0, %v251
        %v253 = vrot.slane %v241, %v252
        %v254 = vlaneseq
        %v255 = vshrl.u32 %v254, 7
        %v256 = vsub.s32 4, %v255
        %v257 = vrot.slane %v241, %v256
        %v260 = vlaneseq
        %v261 = vshrl.u32 %v260, 7
        %v262 = vsub.s32 0, %v261
        %v263 = vrot.slane %v253, %v262
        %v264 = vlaneseq
        %v265 = vshrl.u32 %v264, 7
        %v266 = vsub.s32 0, %v265
        %v267 = vrot.slane %v257, %v266
        %v268 = vmul.f32 %v247, %v263
        %v269 = vmul.f32 %v247, %v267
        %v272 = vcombine.low %v268, %v269
        %v274 = vadd.f32 %v243, %v272
        %275 = vset.pattern.permute.xlu0 1
        %276 = vperm.xlu0 %275, %v242
        %v277 = vpop.permute.xlu0 %276
        %v279 = vlaneseq
        %v280 = vshrl.u32 %v279, 7
        %v281 = vsub.s32 1, %v280
        %v282 = vrot.slane %v241, %v281
        %v283 = vlaneseq
        %v284 = vshrl.u32 %v283, 7
        %v285 = vsub.s32 5, %v284
        %v286 = vrot.slane %v241, %v285
        %v289 = vlaneseq
        %v290 = vshrl.u32 %v289, 7
        %v291 = vsub.s32 1, %v290
        %v292 = vrot.slane %v282, %v291
        %v293 = vlaneseq
        %v294 = vshrl.u32 %v293, 7
        %v295 = vsub.s32 1, %v294
        %v296 = vrot.slane %v286, %v295
        %v297 = vmul.f32 %v277, %v292
        %v298 = vmul.f32 %v277, %v296
        %v301 = vcombine.low %v297, %v298
        %v303 = vadd.f32 %v274, %v301
        %304 = vset.pattern.permute.xlu0 2
        %305 = vperm.xlu0 %304, %v242
        %v306 = vpop.permute.xlu0 %305
        %v308 = vlaneseq
        %v309 = vshrl.u32 %v308, 7
        %v310 = vsub.s32 2, %v309
        %v311 = vrot.slane %v241, %v310
        %v312 = vlaneseq
        %v313 = vshrl.u32 %v312, 7
        %v314 = vsub.s32 6, %v313
        %v315 = vrot.slane %v241, %v314
        %v318 = vlaneseq
        %v319 = vshrl.u32 %v318, 7
        %v320 = vsub.s32 2, %v319
        %v321 = vrot.slane %v311, %v320
        %v322 = vlaneseq
        %v323 = vshrl.u32 %v322, 7
        %v324 = vsub.s32 2, %v323
        %v325 = vrot.slane %v315, %v324
        %v326 = vmul.f32 %v306, %v321
        %v327 = vmul.f32 %v306, %v325
        %v330 = vcombine.low %v326, %v327
        %v332 = vadd.f32 %v303, %v330
        %333 = vset.pattern.permute.xlu0 3
        %334 = vperm.xlu0 %333, %v242
        %v335 = vpop.permute.xlu0 %334
        %v337 = vlaneseq
        %v338 = vshrl.u32 %v337, 7
        %v339 = vsub.s32 3, %v338
        %v340 = vrot.slane %v241, %v339
        %v341 = vlaneseq
        %v342 = vshrl.u32 %v341, 7
        %v343 = vsub.s32 7, %v342
        %v344 = vrot.slane %v241, %v343
        %v347 = vlaneseq
        %v348 = vshrl.u32 %v347, 7
        %v349 = vsub.s32 3, %v348
        %v350 = vrot.slane %v340, %v349
        %v351 = vlaneseq
        %v352 = vshrl.u32 %v351, 7
        %v353 = vsub.s32 3, %v352
        %v354 = vrot.slane %v344, %v353
        %v355 = vmul.f32 %v335, %v350
        %v356 = vmul.f32 %v335, %v354
        %v359 = vcombine.low %v355, %v356
        %v361 = vadd.f32 %v332, %v359
        %362 = vst [vmem:[%s237] sm:$0xff] %v361
        %s363 = sand.u32 %s118, 1
        %s364 = scalar_lea.sflag [#allocation4], %s363
        %s365 = sand.u32 %s118, 1
        %s366 = smul.addr %s365, 8
        %s367 = scalar_lea.vmem [#allocation8], %s366
        // Predicated region
        $region45: #{tpu_custom_call.1} parent=31 // pred_check
          %p368 = pneg %p128
        $region46: #{tpu_custom_call.1} parent=31 // pred_check_branch
          %370 = sbr.rel (%p368) target = $region48
        $region47: #{tpu_custom_call.1} parent=31 // pred_region
          %s371 = smul.u32 2, %s25
          %s373 = ssub.s32 128, 128
          %374 = vsyncadd %s364, %s373
          %s375 = smul.addr %s26, 2
          %s376 = sadd.s32 %s371, %s375
          %s377 = smul.addr %s376, 64
          %s378 = scalar_lea.hbm %s3, %s377
          %s380 = sshll.u32 %s367, 4
          %s381 = int_to_ptr.vmem [resolvable:$true] %s380
          %383 = dma.vmem_to_hbm [thread:$0]  %s381, 128, %s378, %s364
        $region48: #{tpu_custom_call.1} parent=31 // pred_fallthru
          _
      $region32: #{tpu_custom_call.1} parent=5 // pred_fallthru
        _
      %p384 = scmp.le.s32.totalorder 2, %s16
      // Predicated region
      $region49: #{tpu_custom_call.1} parent=5 // pred_check
        %p385 = pneg %p384
      $region50: #{tpu_custom_call.1} parent=5 // pred_check_branch
        %387 = sbr.rel (%p385) target = $region52
      $region51: #{tpu_custom_call.1} parent=5 // pred_region
        %s388 = ssub.s32 %s16, 2
        // Predicated region
        $region53: #{tpu_custom_call.1} parent=51 // pred_check
          %p389 = pneg %p134
        $region54: #{tpu_custom_call.1} parent=51 // pred_check_branch
          %391 = sbr.rel (%p389) target = $region56
        $region55: #{tpu_custom_call.1} parent=51 // pred_region
          %s392 = sand.u32 %s119, 1
          %s393 = scalar_lea.sflag [#allocation4], %s392
          %s394 = sand.u32 %s119, 1
          %s395 = smul.addr %s394, 8
          %s396 = scalar_lea.vmem [#allocation8], %s395
          %397 = dma.done %s393, 128
        $region56: #{tpu_custom_call.1} parent=51 // pred_fallthru
          _
      $region52: #{tpu_custom_call.1} parent=5 // pred_fallthru
        _
    $region6: #{tpu_custom_call.1} parent=1 // loop_footer
      %s20 = sadd.s32 1, %s16
    $region7: #{tpu_custom_call.1} parent=1 // loop_footer_branch
      %15 = sbr.rel target = $region3
    $region8: #{tpu_custom_call.1} parent=1 // loop_exit
      _
    %398 = vsyncpa [#allocation3], 1
    %s399 = scalar_lea.sflag [#allocation3], 1
    %400 = vsyncpa %s399, 1
    %401 = vsyncpa [#allocation6], 1
    %402 = vsyncpa [#allocation4], 1
    %s403 = scalar_lea.sflag [#allocation4], 1
    %404 = vsyncpa %s403, 1

</llo_original>
